<compile_context>
chip_gen: v6e
topology: v6e:2x2x1
jax: 0.10.0
libtpu: 0.0.40
codegen_flags: <defaults>
</compile_context>

<pallas_src>
import functools

import jax
import jax.numpy as jnp
from jax.experimental import pallas as pl
from jax.experimental.pallas import tpu as pltpu

_LANE = 128
_SUBLANE = 8


def _round_up(x, m):
    return (x + m - 1) // m * m


def _gelu(x):
    # tanh approximation of GELU (BERT-style); tanh lowers to the EUP.
    c = 0.7978845608028654  # sqrt(2/pi)
    return 0.5 * x * (1.0 + jnp.tanh(c * (x + 0.044715 * x * x * x)))


# ----------------------------------------------------------------------------- kernels


def _epilogue(h, res_ref, wdn_ref, bdn_ref, wup_ref, bup_ref, g_ref, b_ref, o_ref, eps):
    """dropout(eval)=identity -> bottleneck adapter -> +residual -> LayerNorm (all f32)."""
    f32 = jnp.float32
    # TODO(synk): training-mode dropout (stateful RNG mask) not implemented; eval semantics.
    # adapter_forward (Houlsby-style): h + up(gelu(down(h)))
    a = jnp.dot(h.astype(wdn_ref.dtype), wdn_ref[...], preferred_element_type=f32)
    a = _gelu(a + bdn_ref[...].astype(f32))
    up = jnp.dot(a.astype(wup_ref.dtype), wup_ref[...], preferred_element_type=f32)
    h = h + up + bup_ref[...].astype(f32)

    # LayerNorm(h + input_tensor) with one-pass statistics.
    y = h + res_ref[...].astype(f32)
    mean = jnp.mean(y, axis=-1, keepdims=True)
    mean_sq = jnp.mean(y * y, axis=-1, keepdims=True)
    var = jnp.maximum(mean_sq - mean * mean, 0.0)  # guard cancellation
    y = (y - mean) * jax.lax.rsqrt(var + eps)
    y = y * g_ref[...].astype(f32) + b_ref[...].astype(f32)
    o_ref[...] = y.astype(o_ref.dtype)


def adapter_kernel_resident(x_ref, res_ref, wd_ref, bd_ref, wdn_ref, bdn_ref,
                            wup_ref, bup_ref, g_ref, b_ref, o_ref, *, eps):
    # Dense weight fully resident: single MXU pass, no VMEM accumulator.
    h = jnp.dot(x_ref[...].astype(wd_ref.dtype), wd_ref[...],
                preferred_element_type=jnp.float32)
    h = h + bd_ref[...].astype(jnp.float32)
    _epilogue(h, res_ref, wdn_ref, bdn_ref, wup_ref, bup_ref, g_ref, b_ref, o_ref, eps)


def adapter_kernel_ktiled(x_ref, res_ref, wd_ref, bd_ref, wdn_ref, bdn_ref,
                          wup_ref, bup_ref, g_ref, b_ref, o_ref, acc_ref, *, eps):
    k = pl.program_id(1)

    @pl.when(k == 0)
    def _():
        acc_ref[...] = jnp.zeros_like(acc_ref)

    acc_ref[...] += jnp.dot(x_ref[...].astype(wd_ref.dtype), wd_ref[...],
                            preferred_element_type=jnp.float32)

    @pl.when(k == pl.num_programs(1) - 1)
    def _():
        h = acc_ref[...] + bd_ref[...].astype(jnp.float32)
        _epilogue(h, res_ref, wdn_ref, bdn_ref, wup_ref, bup_ref, g_ref, b_ref, o_ref, eps)


# ------------------------------------------------------------------- hardware policy


def _vmem_limit_bytes():
    """~85% of this generation's VMEM (capped at 100 MiB); conservative fallback = 64 MiB."""
    try:
        cap = int(pltpu.get_tpu_info().vmem_capacity_bytes)
    except Exception:
        cap = 64 * 1024 * 1024
    return min(int(cap * 0.85), 100 * 1024 * 1024)


_SINGLE_BUFFER_OK = None


def _single_buffer_supported():
    """One-time probe: does this build lower pipeline_mode=pl.Buffered(1) on a constant
    operand?  Avoids wrapping the real kernel in a broad try/except."""
    global _SINGLE_BUFFER_OK
    if _SINGLE_BUFFER_OK is None:
        def _probe(a_ref, c_ref, o_ref):
            o_ref[...] = a_ref[...] + c_ref[...]

        try:
            a = jnp.zeros((2 * _SUBLANE, _LANE), jnp.float32)
            c = jnp.ones((_SUBLANE, _LANE), jnp.float32)
            out = pl.pallas_call(
                _probe,
                out_shape=jax.ShapeDtypeStruct((2 * _SUBLANE, _LANE), jnp.float32),
                grid=(2,),
                in_specs=[
                    pl.BlockSpec((_SUBLANE, _LANE), lambda i: (i, 0)),
                    pl.BlockSpec((_SUBLANE, _LANE), lambda i: (0, 0),
                                 pipeline_mode=pl.Buffered(1)),
                ],
                out_specs=pl.BlockSpec((_SUBLANE, _LANE), lambda i: (i, 0)),
            )(a, c)
            jax.block_until_ready(out)
            _SINGLE_BUFFER_OK = bool(jnp.allclose(out, 1.0))
        except Exception:
            _SINGLE_BUFFER_OK = False
    return _SINGLE_BUFFER_OK


# ----------------------------------------------------------------------- tiling logic


def _pad_adapter(w_down, b_down, w_up):
    """Zero-pad the adapter bottleneck to a multiple of 128 lanes (exact: gelu(0)=0)."""
    a = w_down.shape[-1]
    a_pad = _round_up(a, _LANE)
    if a_pad != a:
        pad = a_pad - a
        w_down = jnp.pad(w_down, ((0, 0), (0, pad)))
        b_down = jnp.pad(b_down, ((0, 0), (0, pad)))
        w_up = jnp.pad(w_up, ((0, pad), (0, 0)))
    return w_down, b_down, w_up


def _choose_k_tiling(D_in, D_h, w_itemsize, tk, vmem_limit):
    """Return (padded D_in, K tile, number of K tiles)."""
    if tk is None:
        if D_in * D_h * w_itemsize <= vmem_limit // 2:
            return D_in, D_in, 1  # keep base.dense.weight fully resident (fetched once)
        # K-tiled: the weight tile is double-buffered, so budget per buffer.
        per_buf = max(vmem_limit // 8, _LANE * D_h * w_itemsize)
        tk = (per_buf // (D_h * w_itemsize)) // _LANE * _LANE
    if tk >= D_in:
        return D_in, D_in, 1
    D_in_p = _round_up(D_in, _LANE)  # keep the lane dim 128-aligned when K-tiling
    tk = min(max(_LANE, (tk // _LANE) * _LANE), D_in_p)
    while D_in_p % tk != 0:
        tk -= _LANE
    return D_in_p, tk, D_in_p // tk


def _choose_tm(M, tm_req, per_row_bytes, budget_bytes):
    tm = 512 if tm_req is None else tm_req
    tm = min(tm, M)
    if tm < M:
        tm = max(_SUBLANE, (tm // _SUBLANE) * _SUBLANE)
    # Shrink until the per-tile VMEM estimate fits the budget.
    while tm > _SUBLANE and tm * per_row_bytes > budget_bytes:
        tm = max(_SUBLANE, ((tm // 2) // _SUBLANE) * _SUBLANE)
    if M > _SUBLANE:
        nm = pl.cdiv(M, tm)
        if nm < 2:
            # >=2 M tiles so the "parallel" axis can shard across 2 TensorCores (v7x).
            tm = max(_SUBLANE, _round_up(pl.cdiv(M, 2), _SUBLANE))
            nm = pl.cdiv(M, tm)
        if nm > 1 and nm % 2 == 1:
            # Prefer an even tile count (balanced across the two cores).
            tm_even = max(_SUBLANE, _round_up(pl.cdiv(M, nm + 1), _SUBLANE))
            if pl.cdiv(M, tm_even) % 2 == 0:
                tm = tm_even
    return tm


# --------------------------------------------------------------------------- wrapper


def adapter_bert_output(
    hidden_states,   # (B, S, D_in)
    input_tensor,    # (B, S, D_h)
    params,          # dict of weights (see init_params)
    *,
    eps=1e-12,
    tm=None,
    tk=None,
    compute_dtype=jnp.bfloat16,
    training=False,
):
    if training:
        # TODO(synk): training-mode dropout (stateful RNG mask) not implemented.
        raise NotImplementedError("This Pallas kernel implements eval-mode dropout only.")

    B, S, D_in = hidden_states.shape
    D_h = input_tensor.shape[-1]
    out_dtype = hidden_states.dtype
    M = B * S

    # Activations stay in their native dtype; the (tm, tk) tile is cast to the matmul
    # dtype inside the kernel (no wrapper-side HBM round trip for the cast).
    x2d = hidden_states.reshape(M, D_in)
    r2d = input_tensor.reshape(M, D_h)

    w_dense = params["w_dense"].astype(compute_dtype)
    w_down, b_down, w_up = _pad_adapter(
        params["w_down"].astype(compute_dtype),
        params["b_down"],
        params["w_up"].astype(compute_dtype),
    )
    A = w_down.shape[-1]

    w_itemsize = jnp.dtype(compute_dtype).itemsize
    vmem_limit = _vmem_limit_bytes()
    single_buffer = _single_buffer_supported()

    D_in_p, tk_eff, nk = _choose_k_tiling(D_in, D_h, w_itemsize, tk, vmem_limit)
    if D_in_p != D_in:
        # Exact: padded x columns and padded weight rows are both zero.
        x2d = jnp.pad(x2d, ((0, 0), (0, D_in_p - D_in)))
        w_dense = jnp.pad(w_dense, ((0, D_in_p - D_in), (0, 0)))

    # Fixed (tile-independent) VMEM: dense weight + adapter weights + small vectors.
    const_buf = 1 if single_buffer else 2
    if nk == 1:
        fixed = const_buf * D_in_p * D_h * w_itemsize
    else:
        fixed = 2 * tk_eff * D_h * w_itemsize          # K-tiled weight is double-buffered
    fixed += const_buf * w_itemsize * (D_h * A + A * D_h)
    fixed += const_buf * 4 * (4 * D_h + A)

    per_row = (2 * tk_eff * x2d.dtype.itemsize          # x (double-buffered)
               + 2 * D_h * r2d.dtype.itemsize           # residual
               + 2 * D_h * jnp.dtype(out_dtype).itemsize  # output
               + 3 * D_h * 4 + A * 4)                   # epilogue f32 temporaries
    if nk > 1:
        per_row += D_h * 4                              # f32 accumulator scratch
    budget = max(int(0.8 * vmem_limit) - fixed, _SUBLANE * per_row)
    tm_eff = _choose_tm(M, tm, per_row, budget)
    nm = pl.cdiv(M, tm_eff)

    cost = pl.CostEstimate(
        flops=int(2 * M * D_in_p * D_h + 4 * M * D_h * A),
        transcendentals=int(M * A),
        bytes_accessed=int(
            x2d.size * x2d.dtype.itemsize
            + r2d.size * r2d.dtype.itemsize
            + w_dense.size * w_dense.dtype.itemsize
            + w_down.size * w_down.dtype.itemsize
            + w_up.size * w_up.dtype.itemsize
            + M * D_h * jnp.dtype(out_dtype).itemsize
        ),
    )

    const_mode = pl.Buffered(1) if single_buffer else None

    if nk == 1:
        def const_spec(shape):
            zeros = (0,) * len(shape)
            idx = lambda i, z=zeros: z
            if const_mode is None:
                return pl.BlockSpec(shape, idx)
            return pl.BlockSpec(shape, idx, pipeline_mode=const_mode)

        grid_spec = pltpu.PrefetchScalarGridSpec(
            num_scalar_prefetch=0,
            grid=(nm,),
            in_specs=[
                pl.BlockSpec((tm_eff, D_in_p), lambda i: (i, 0)),   # x (full K)
                pl.BlockSpec((tm_eff, D_h), lambda i: (i, 0)),      # residual
                const_spec((D_in_p, D_h)),                          # dense weight (resident)
                const_spec((1, D_h)),                               # dense bias
                const_spec((D_h, A)),                               # adapter down W
                const_spec((1, A)),                                 # adapter down b
                const_spec((A, D_h)),                               # adapter up W
                const_spec((1, D_h)),                               # adapter up b
                const_spec((1, D_h)),                               # LN gamma
                const_spec((1, D_h)),                               # LN beta
            ],
            out_specs=pl.BlockSpec((tm_eff, D_h), lambda i: (i, 0)),
        )
        kernel = functools.partial(adapter_kernel_resident, eps=eps)
        dim_sem = ("parallel",)
    else:
        def const_spec(shape):
            zeros = (0,) * len(shape)
            idx = lambda i, k, z=zeros: z
            if const_mode is None:
                return pl.BlockSpec(shape, idx)
            return pl.BlockSpec(shape, idx, pipeline_mode=const_mode)

        grid_spec = pltpu.PrefetchScalarGridSpec(
            num_scalar_prefetch=0,
            grid=(nm, nk),                                          # reduction axis last
            in_specs=[
                pl.BlockSpec((tm_eff, tk_eff), lambda i, k: (i, k)),    # x
                pl.BlockSpec((tm_eff, D_h), lambda i, k: (i, 0)),       # residual
                pl.BlockSpec((tk_eff, D_h), lambda i, k: (k, 0)),       # dense weight (K-tiled)
                const_spec((1, D_h)),
                const_spec((D_h, A)),
                const_spec((1, A)),
                const_spec((A, D_h)),
                const_spec((1, D_h)),
                const_spec((1, D_h)),
                const_spec((1, D_h)),
            ],
            out_specs=pl.BlockSpec((tm_eff, D_h), lambda i, k: (i, 0)),
            scratch_shapes=[pltpu.VMEM((tm_eff, D_h), jnp.float32)],
        )
        kernel = functools.partial(adapter_kernel_ktiled, eps=eps)
        dim_sem = ("parallel", "arbitrary")

    out = pl.pallas_call(
        kernel,
        out_shape=jax.ShapeDtypeStruct((M, D_h), out_dtype),
        grid_spec=grid_spec,
        compiler_params=pltpu.CompilerParams(
            dimension_semantics=dim_sem,
            vmem_limit_bytes=vmem_limit,
        ),
        cost_estimate=cost,
    )(x2d, r2d, w_dense, params["b_dense"], w_down, b_down, w_up,
      params["b_up"], params["ln_gamma"], params["ln_beta"])

    return out.reshape(B, S, D_h)


# ----------------------------------------------------------------------------- params


def init_params(key, d_in, d_h, adapter_size, dtype=jnp.bfloat16):
    ks = jax.random.split(key, 3)
    scale_d = 1.0 / jnp.sqrt(d_in)
    scale_dn = 1.0 / jnp.sqrt(d_h)
    scale_up = 1.0 / jnp.sqrt(adapter_size)
    return {
        "w_dense": (jax.random.normal(ks[0], (d_in, d_h)) * scale_d).astype(dtype),
        "b_dense": jnp.zeros((1, d_h), dtype),
        "w_down": (jax.random.normal(ks[1], (d_h, adapter_size)) * scale_dn).astype(dtype),
        "b_down": jnp.zeros((1, adapter_size), dtype),
        "w_up": (jax.random.normal(ks[2], (adapter_size, d_h)) * scale_up).astype(dtype),
        "b_up": jnp.zeros((1, d_h), dtype),
        "ln_gamma": jnp.ones((1, d_h), dtype),
        "ln_beta": jnp.zeros((1, d_h), dtype),
    }


def _reference(hidden_states, input_tensor, p, eps=1e-12, compute_dtype=jnp.bfloat16):
    """Pure-JAX reference mirroring the kernel's mixed-precision cast points."""
    f32 = jnp.float32
    x = hidden_states.astype(compute_dtype)
    h = jnp.dot(x, p["w_dense"].astype(compute_dtype), preferred_element_type=f32)
    h = h + p["b_dense"].astype(f32)
    a = jnp.dot(h.astype(compute_dtype), p["w_down"].astype(compute_dtype),
                preferred_element_type=f32) + p["b_down"].astype(f32)
    a = _gelu(a)
    h = h + jnp.dot(a.astype(compute_dtype), p["w_up"].astype(compute_dtype),
                    preferred_element_type=f32) + p["b_up"].astype(f32)
    y = h + input_tensor.astype(f32)
    mean = y.mean(-1, keepdims=True)
    var = jnp.square(y - mean).mean(-1, keepdims=True)
    y = (y - mean) * jax.lax.rsqrt(var + eps)
    return y * p["ln_gamma"].astype(f32) + p["ln_beta"].astype(f32)


if __name__ == "__main__":
    key = jax.random.PRNGKey(0)
    k_x, k_r, k_p = jax.random.split(key, 3)

    B, S = 2, 8
    D_IN = 64      # BERT "intermediate" size (small)
    D_H = 32       # hidden size (small)
    ADAPTER = 8    # adapter bottleneck size (padded to 128 lanes internally)

    hidden_states = jax.random.normal(k_x, (B, S, D_IN), jnp.float32).astype(jnp.bfloat16)
    input_tensor = jax.random.normal(k_r, (B, S, D_H), jnp.float32).astype(jnp.bfloat16)
    params = init_params(k_p, D_IN, D_H, ADAPTER, dtype=jnp.bfloat16)

    out = adapter_bert_output(hidden_states, input_tensor, params)
    out = jax.block_until_ready(out)

    ref = _reference(hidden_states, input_tensor, params)
    assert out.shape == (B, S, D_H)
    assert jnp.allclose(out.astype(jnp.float32), ref.astype(jnp.float32),
                        atol=2e-2, rtol=2e-2), "mismatch vs reference"

    print("KERNEL_OK")
</pallas_src>

<mosaic_0001>
module attributes {stable_mosaic.version = 11 : i64} {
  func.func @_probe(%arg0: i32, %arg1: memref<8x128xf32, #tpu.memory_space<vmem>>, %arg2: memref<8x128xf32, #tpu.memory_space<vmem>>, %arg3: memref<8x128xf32, #tpu.memory_space<vmem>>) attributes {dimension_semantics = [#tpu.dimension_semantics<arbitrary>], iteration_bounds = array<i64: 2>, scalar_prefetch = 0 : i64, scratch_operands = 0 : i64, tpu.core_type = #tpu.core_type<tc>, window_params = [{transform_indices = @transform_0, window_bounds = array<i64: 8, 128>}, {pipeline_mode = #tpu.pipeline_mode<synchronous>, transform_indices = @transform_1, window_bounds = array<i64: 8, 128>}, {transform_indices = @transform_2, window_bounds = array<i64: 8, 128>}]} {
    %c0 = arith.constant 0 : index
    %c0_0 = arith.constant 0 : index
    %0 = vector.load %arg1[%c0, %c0_0] : memref<8x128xf32, #tpu.memory_space<vmem>>, vector<8x128xf32>
    %c0_1 = arith.constant 0 : index
    %c0_2 = arith.constant 0 : index
    %1 = vector.load %arg2[%c0_1, %c0_2] : memref<8x128xf32, #tpu.memory_space<vmem>>, vector<8x128xf32>
    %2 = arith.addf %0, %1 : vector<8x128xf32>
    %c0_3 = arith.constant 0 : index
    %c0_4 = arith.constant 0 : index
    %3 = vector.load %arg3[%c0_3, %c0_4] : memref<8x128xf32, #tpu.memory_space<vmem>>, vector<8x128xf32>
    tpu.vector_store %arg3[%c0_3, %c0_4], %2 {strides = array<i32>} : memref<8x128xf32, #tpu.memory_space<vmem>>, vector<8x128xf32>,
    return
  }
  func.func @transform_0(%arg0: i32) -> (i32, i32) {
    %c0_i32 = arith.constant 0 : i32
    %c0_i32_0 = arith.constant 0 : i32
    return %arg0, %c0_i32 : i32, i32
  }
  func.func @transform_1(%arg0: i32) -> (i32, i32) {
    %c0_i32 = arith.constant 0 : i32
    %c0_i32_0 = arith.constant 0 : i32
    %c0_i32_1 = arith.constant 0 : i32
    return %c0_i32, %c0_i32_0 : i32, i32
  }
  func.func @transform_2(%arg0: i32) -> (i32, i32) {
    %c0_i32 = arith.constant 0 : i32
    %c0_i32_0 = arith.constant 0 : i32
    return %arg0, %c0_i32 : i32, i32
  }
}

module attributes {stable_mosaic.version = 11 : i64} {
  func.func @adapter_kernel_resident(%arg0: i32, %arg1: memref<8x64xbf16, #tpu.memory_space<vmem>>, %arg2: memref<8x32xbf16, #tpu.memory_space<vmem>>, %arg3: memref<64x32xbf16, #tpu.memory_space<vmem>>, %arg4: memref<1x32xbf16, #tpu.memory_space<vmem>>, %arg5: memref<32x128xbf16, #tpu.memory_space<vmem>>, %arg6: memref<1x128xbf16, #tpu.memory_space<vmem>>, %arg7: memref<128x32xbf16, #tpu.memory_space<vmem>>, %arg8: memref<1x32xbf16, #tpu.memory_space<vmem>>, %arg9: memref<1x32xbf16, #tpu.memory_space<vmem>>, %arg10: memref<1x32xbf16, #tpu.memory_space<vmem>>, %arg11: memref<8x32xbf16, #tpu.memory_space<vmem>>) attributes {dimension_semantics = [#tpu.dimension_semantics<parallel>], iteration_bounds = array<i64: 2>, scalar_prefetch = 0 : i64, scratch_operands = 0 : i64, tpu.core_type = #tpu.core_type<tc>, window_params = [{transform_indices = @transform_0, window_bounds = array<i64: 8, 64>}, {transform_indices = @transform_1, window_bounds = array<i64: 8, 32>}, {pipeline_mode = #tpu.pipeline_mode<synchronous>, transform_indices = @transform_2, window_bounds = array<i64: 64, 32>}, {pipeline_mode = #tpu.pipeline_mode<synchronous>, transform_indices = @transform_3, window_bounds = array<i64: 1, 32>}, {pipeline_mode = #tpu.pipeline_mode<synchronous>, transform_indices = @transform_4, window_bounds = array<i64: 32, 128>}, {pipeline_mode = #tpu.pipeline_mode<synchronous>, transform_indices = @transform_5, window_bounds = array<i64: 1, 128>}, {pipeline_mode = #tpu.pipeline_mode<synchronous>, transform_indices = @transform_6, window_bounds = array<i64: 128, 32>}, {pipeline_mode = #tpu.pipeline_mode<synchronous>, transform_indices = @transform_7, window_bounds = array<i64: 1, 32>}, {pipeline_mode = #tpu.pipeline_mode<synchronous>, transform_indices = @transform_8, window_bounds = array<i64: 1, 32>}, {pipeline_mode = #tpu.pipeline_mode<synchronous>, transform_indices = @transform_9, window_bounds = array<i64: 1, 32>}, {transform_indices = @transform_10, window_bounds = array<i64: 8, 32>}]} {
    %c0 = arith.constant 0 : index
    %c0_0 = arith.constant 0 : index
    %0 = vector.load %arg1[%c0, %c0_0] : memref<8x64xbf16, #tpu.memory_space<vmem>>, vector<8x64xbf16>
    %c0_1 = arith.constant 0 : index
    %c0_2 = arith.constant 0 : index
    %1 = vector.load %arg3[%c0_1, %c0_2] : memref<64x32xbf16, #tpu.memory_space<vmem>>, vector<64x32xbf16>
    %cst = arith.constant dense<0.000000e+00> : vector<8x32xf32>
    %2 = tpu.matmul %0, %1, %cst {dimension_numbers = #tpu.dot_dimension_numbers<[1], [0], [0], [1], [0, 0, 1, 1], [], []>} : vector<8x64xbf16>, vector<64x32xbf16>, vector<8x32xf32> -> vector<8x32xf32>
    %c0_3 = arith.constant 0 : index
    %c0_4 = arith.constant 0 : index
    %3 = vector.load %arg4[%c0_3, %c0_4] : memref<1x32xbf16, #tpu.memory_space<vmem>>, vector<1x32xbf16>
    %4 = arith.extf %3 : vector<1x32xbf16> to vector<1x32xf32>
    %5 = vector.broadcast %4 : vector<1x32xf32> to vector<8x32xf32>
    %6 = arith.addf %2, %5 : vector<8x32xf32>
    %7 = arith.truncf %6 : vector<8x32xf32> to vector<8x32xbf16>
    %c0_5 = arith.constant 0 : index
    %c0_6 = arith.constant 0 : index
    %8 = vector.load %arg5[%c0_5, %c0_6] : memref<32x128xbf16, #tpu.memory_space<vmem>>, vector<32x128xbf16>
    %cst_7 = arith.constant dense<0.000000e+00> : vector<8x128xf32>
    %9 = tpu.matmul %7, %8, %cst_7 {dimension_numbers = #tpu.dot_dimension_numbers<[1], [0], [0], [1], [0, 0, 1, 1], [], []>} : vector<8x32xbf16>, vector<32x128xbf16>, vector<8x128xf32> -> vector<8x128xf32>
    %c0_8 = arith.constant 0 : index
    %c0_9 = arith.constant 0 : index
    %10 = vector.load %arg6[%c0_8, %c0_9] : memref<1x128xbf16, #tpu.memory_space<vmem>>, vector<1x128xbf16>
    %11 = arith.extf %10 : vector<1x128xbf16> to vector<1x128xf32>
    %12 = vector.broadcast %11 : vector<1x128xf32> to vector<8x128xf32>
    %13 = arith.addf %9, %12 : vector<8x128xf32>
    %cst_10 = arith.constant 5.000000e-01 : f32
    %14 = vector.broadcast %cst_10 : f32 to vector<8x128xf32>
    %15 = arith.mulf %14, %13 : vector<8x128xf32>
    %cst_11 = arith.constant 4.471500e-02 : f32
    %16 = vector.broadcast %cst_11 : f32 to vector<8x128xf32>
    %17 = arith.mulf %16, %13 : vector<8x128xf32>
    %18 = arith.mulf %17, %13 : vector<8x128xf32>
    %19 = arith.mulf %18, %13 : vector<8x128xf32>
    %20 = arith.addf %13, %19 : vector<8x128xf32>
    %cst_12 = arith.constant 0.797884583 : f32
    %21 = vector.broadcast %cst_12 : f32 to vector<8x128xf32>
    %22 = arith.mulf %21, %20 : vector<8x128xf32>
    %23 = math.tanh %22 : vector<8x128xf32>
    %cst_13 = arith.constant 1.000000e+00 : f32
    %24 = vector.broadcast %cst_13 : f32 to vector<8x128xf32>
    %25 = arith.addf %24, %23 : vector<8x128xf32>
    %26 = arith.mulf %15, %25 : vector<8x128xf32>
    %27 = arith.truncf %26 : vector<8x128xf32> to vector<8x128xbf16>
    %c0_14 = arith.constant 0 : index
    %c0_15 = arith.constant 0 : index
    %28 = vector.load %arg7[%c0_14, %c0_15] : memref<128x32xbf16, #tpu.memory_space<vmem>>, vector<128x32xbf16>
    %cst_16 = arith.constant dense<0.000000e+00> : vector<8x32xf32>
    %29 = tpu.matmul %27, %28, %cst_16 {dimension_numbers = #tpu.dot_dimension_numbers<[1], [0], [0], [1], [0, 0, 1, 1], [], []>} : vector<8x128xbf16>, vector<128x32xbf16>, vector<8x32xf32> -> vector<8x32xf32>
    %30 = arith.addf %6, %29 : vector<8x32xf32>
    %c0_17 = arith.constant 0 : index
    %c0_18 = arith.constant 0 : index
    %31 = vector.load %arg8[%c0_17, %c0_18] : memref<1x32xbf16, #tpu.memory_space<vmem>>, vector<1x32xbf16>
    %32 = arith.extf %31 : vector<1x32xbf16> to vector<1x32xf32>
    %33 = vector.broadcast %32 : vector<1x32xf32> to vector<8x32xf32>
    %34 = arith.addf %30, %33 : vector<8x32xf32>
    %c0_19 = arith.constant 0 : index
    %c0_20 = arith.constant 0 : index
    %35 = vector.load %arg2[%c0_19, %c0_20] : memref<8x32xbf16, #tpu.memory_space<vmem>>, vector<8x32xbf16>
    %36 = arith.extf %35 : vector<8x32xbf16> to vector<8x32xf32>
    %37 = arith.addf %34, %36 : vector<8x32xf32>
    %cst_21 = arith.constant dense<0.000000e+00> : vector<8xf32>
    %38 = vector.multi_reduction <add>, %37, %cst_21 [1] : vector<8x32xf32> to vector<8xf32>
    %39 = vector.shape_cast %38 : vector<8xf32> to vector<8x1xf32>
    %cst_22 = arith.constant 3.200000e+01 : f32
    %40 = vector.broadcast %cst_22 : f32 to vector<8x1xf32>
    %41 = arith.divf %39, %40 : vector<8x1xf32>
    %42 = arith.mulf %37, %37 : vector<8x32xf32>
    %cst_23 = arith.constant dense<0.000000e+00> : vector<8xf32>
    %43 = vector.multi_reduction <add>, %42, %cst_23 [1] : vector<8x32xf32> to vector<8xf32>
    %44 = vector.shape_cast %43 : vector<8xf32> to vector<8x1xf32>
    %cst_24 = arith.constant 3.200000e+01 : f32
    %45 = vector.broadcast %cst_24 : f32 to vector<8x1xf32>
    %46 = arith.divf %44, %45 : vector<8x1xf32>
    %47 = arith.mulf %41, %41 : vector<8x1xf32>
    %48 = arith.subf %46, %47 : vector<8x1xf32>
    %cst_25 = arith.constant 0.000000e+00 : f32
    %49 = vector.broadcast %cst_25 : f32 to vector<8x1xf32>
    %50 = arith.maximumf %48, %49 : vector<8x1xf32>
    %51 = vector.broadcast %41 : vector<8x1xf32> to vector<8x32xf32>
    %52 = arith.subf %37, %51 : vector<8x32xf32>
    %cst_26 = arith.constant 9.99999996E-13 : f32
    %53 = vector.broadcast %cst_26 : f32 to vector<8x1xf32>
    %54 = arith.addf %50, %53 : vector<8x1xf32>
    %55 = math.rsqrt %54 : vector<8x1xf32>
    %56 = vector.broadcast %55 : vector<8x1xf32> to vector<8x32xf32>
    %57 = arith.mulf %52, %56 : vector<8x32xf32>
    %c0_27 = arith.constant 0 : index
    %c0_28 = arith.constant 0 : index
    %58 = vector.load %arg9[%c0_27, %c0_28] : memref<1x32xbf16, #tpu.memory_space<vmem>>, vector<1x32xbf16>
    %59 = arith.extf %58 : vector<1x32xbf16> to vector<1x32xf32>
    %60 = vector.broadcast %59 : vector<1x32xf32> to vector<8x32xf32>
    %61 = arith.mulf %57, %60 : vector<8x32xf32>
    %c0_29 = arith.constant 0 : index
    %c0_30 = arith.constant 0 : index
    %62 = vector.load %arg10[%c0_29, %c0_30] : memref<1x32xbf16, #tpu.memory_space<vmem>>, vector<1x32xbf16>
    %63 = arith.extf %62 : vector<1x32xbf16> to vector<1x32xf32>
    %64 = vector.broadcast %63 : vector<1x32xf32> to vector<8x32xf32>
    %65 = arith.addf %61, %64 : vector<8x32xf32>
    %66 = arith.truncf %65 : vector<8x32xf32> to vector<8x32xbf16>
    %c0_31 = arith.constant 0 : index
    %c0_32 = arith.constant 0 : index
    %67 = vector.load %arg11[%c0_31, %c0_32] : memref<8x32xbf16, #tpu.memory_space<vmem>>, vector<8x32xbf16>
    tpu.vector_store %arg11[%c0_31, %c0_32], %66 {strides = array<i32>} : memref<8x32xbf16, #tpu.memory_space<vmem>>, vector<8x32xbf16>,
    return
  }
  func.func @transform_0(%arg0: i32) -> (i32, i32) {
    %c0_i32 = arith.constant 0 : i32
    %c0_i32_0 = arith.constant 0 : i32
    return %arg0, %c0_i32 : i32, i32
  }
  func.func @transform_1(%arg0: i32) -> (i32, i32) {
    %c0_i32 = arith.constant 0 : i32
    %c0_i32_0 = arith.constant 0 : i32
    return %arg0, %c0_i32 : i32, i32
  }
  func.func @transform_2(%arg0: i32) -> (i32, i32) {
    %c0_i32 = arith.constant 0 : i32
    %c0_i32_0 = arith.constant 0 : i32
    %c0_i32_1 = arith.constant 0 : i32
    return %c0_i32, %c0_i32_0 : i32, i32
  }
  func.func @transform_3(%arg0: i32) -> (i32, i32) {
    %c0_i32 = arith.constant 0 : i32
    %c0_i32_0 = arith.constant 0 : i32
    %c0_i32_1 = arith.constant 0 : i32
    return %c0_i32, %c0_i32_0 : i32, i32
  }
  func.func @transform_4(%arg0: i32) -> (i32, i32) {
    %c0_i32 = arith.constant 0 : i32
    %c0_i32_0 = arith.constant 0 : i32
    %c0_i32_1 = arith.constant 0 : i32
    return %c0_i32, %c0_i32_0 : i32, i32
  }
  func.func @transform_5(%arg0: i32) -> (i32, i32) {
    %c0_i32 = arith.constant 0 : i32
    %c0_i32_0 = arith.constant 0 : i32
    %c0_i32_1 = arith.constant 0 : i32
    return %c0_i32, %c0_i32_0 : i32, i32
  }
  func.func @transform_6(%arg0: i32) -> (i32, i32) {
    %c0_i32 = arith.constant 0 : i32
    %c0_i32_0 = arith.constant 0 : i32
    %c0_i32_1 = arith.constant 0 : i32
    return %c0_i32, %c0_i32_0 : i32, i32
  }
  func.func @transform_7(%arg0: i32) -> (i32, i32) {
    %c0_i32 = arith.constant 0 : i32
    %c0_i32_0 = arith.constant 0 : i32
    %c0_i32_1 = arith.constant 0 : i32
    return %c0_i32, %c0_i32_0 : i32, i32
  }
  func.func @transform_8(%arg0: i32) -> (i32, i32) {
    %c0_i32 = arith.constant 0 : i32
    %c0_i32_0 = arith.constant 0 : i32
    %c0_i32_1 = arith.constant 0 : i32
    return %c0_i32, %c0_i32_0 : i32, i32
  }
  func.func @transform_9(%arg0: i32) -> (i32, i32) {
    %c0_i32 = arith.constant 0 : i32
    %c0_i32_0 = arith.constant 0 : i32
    %c0_i32_1 = arith.constant 0 : i32
    return %c0_i32, %c0_i32_0 : i32, i32
  }
  func.func @transform_10(%arg0: i32) -> (i32, i32) {
    %c0_i32 = arith.constant 0 : i32
    %c0_i32_0 = arith.constant 0 : i32
    return %arg0, %c0_i32 : i32, i32
  }
}

</mosaic_0001>

<llo_original>
// kernel: tpu_custom_call.1
$region0: #{tpu_custom_call.1}
  #allocation0 [shape = 'u32[]', space=smem, size = 0x4, offset = 0x4, fixed_abs, tag = 'smem constant byte address 0x4 - core index']
  #allocation1 [shape = 'u32[144,128]{1,0:T(1,128)}', space=vmem, size = 0x12000, scoped, tag = 'internal scratch']
  %s0 = inlined_call_operand.hbm [shape: f32[16,128], index: 0, kind: input, shape index: {}]
  %s1 = inlined_call_operand.hbm [shape: f32[8,128], index: 1, kind: input, shape index: {}]
  %s2 = inlined_call_operand.hbm [shape: f32[16,128], index: 2, kind: output, shape index: {}]
  %s3 = sld [smem:[#allocation0]]
  $region49: #{tpu_custom_call.1} parent=0
    _
  %s5 = ssub.s32 1, %s3
  %s6 = scalar_select 0, %s5, %s3
  $region1: #{tpu_custom_call.1} parent=0
    #allocation2 [shape = 'u8[8192]{0}', space=vmem, size = 0x2000, scoped, tag = 'input window, operand 0']
    #allocation3 [shape = 's32[2]{0}', space=sflag, size = 0x8, scoped, tag = 'scoped memory for tpu_custom_call.1']
    #allocation4 [shape = 's32[2]{0}', space=sflag, size = 0x8, scoped, tag = 'scoped memory for tpu_custom_call.1']
    #allocation5 [shape = 'u8[4096]{0}', space=vmem, size = 0x1000, scoped, tag = 'input window, operand 1, single buffered']
    #allocation6 [shape = 's32[1]{0}', space=sflag, size = 0x4, scoped, tag = 'scoped memory for tpu_custom_call.1']
    #allocation7 [shape = 'u8[8192]{0}', space=vmem, size = 0x2000, scoped, tag = 'output window, operand 0']
    %7 = vsyncpa [#allocation3], 0
    %s8 = scalar_lea.sflag [#allocation3], 1
    %9 = vsyncpa %s8, 0
    %10 = vsyncpa [#allocation6], 0
    %11 = vsyncpa [#allocation4], 0
    %s12 = scalar_lea.sflag [#allocation4], 1
    %13 = vsyncpa %s12, 0
    loop: start=0, step=1, limit=4
    $region2: #{tpu_custom_call.1} parent=1 // loop_pre_header
      _
    $region3: #{tpu_custom_call.1} parent=1 // loop_header
      %s15 = sphi 0, %s19
      %p16 = scmp.ge.s32.totalorder %s15, 4
      %s25 = sphi 0, %s27
      %s28 = sphi 0, %s25
      %s29 = sphi 0, %s28
      %s45 = sphi 0, %s29
      %s49 = sphi 0, %s49
      %s51 = sphi 0, %s49
      %s52 = sphi 0, %s51
      %s66 = sphi 0, %s52
      %s72 = sphi 0, %s74
      %s75 = sphi 0, %s72
      %s76 = sphi 0, %s75
      %s92 = sphi 0, %s76
    $region4: #{tpu_custom_call.1} parent=1 // loop_header_branch
      %18 = sbr.rel (%p16) target = $region8
    $region5: #{tpu_custom_call.1} parent=1 // loop_body
      %s20 = ssub.s32 %s15, 1
      %s21 = ssub.s32 %s15, 2
      %s22 = sadd.s32 %s15, 1
      %s23 = ssub.s32 %s15, %s22
      %p24 = scmp.eq.s32.totalorder %s23, 0
      %s26 = sadd.s32 %s25, 1
      %s27 = scalar_select %p24, %s25, %s26
      %p30 = pneg %p24
      %p31 = scmp.eq.s32.totalorder %s15, 1
      %p32 = por %p30, %p31
      %p33 = scmp.ne.s32.totalorder %s25, %s28
      %p34 = scmp.eq.s32.totalorder %s15, 0
      %p35 = por %p33, %p34
      %p36 = scmp.ne.s32.totalorder %s25, %s28
      %p37 = scmp.eq.s32.totalorder %s20, 1
      %p38 = por %p36, %p37
      %p39 = scmp.ne.s32.totalorder %s28, %s29
      %p40 = scmp.eq.s32.totalorder %s20, 0
      %p41 = por %p39, %p40
      %p42 = scmp.ne.s32.totalorder %s28, %s29
      %p43 = scmp.eq.s32.totalorder %s21, 1
      %p44 = por %p42, %p43
      %p46 = scmp.ne.s32.totalorder %s29, %s45
      %p47 = scmp.eq.s32.totalorder %s21, 0
      %p48 = por %p46, %p47
      %s50 = sadd.s32 %s49, 1
      %p53 = scmp.eq.s32.totalorder %s15, 1
      %p54 = scmp.ne.s32.totalorder %s49, %s51
      %p55 = scmp.eq.s32.totalorder %s15, 0
      %p56 = por %p54, %p55
      %p57 = scmp.ne.s32.totalorder %s49, %s51
      %p58 = scmp.eq.s32.totalorder %s20, 1
      %p59 = por %p57, %p58
      %p60 = scmp.ne.s32.totalorder %s51, %s52
      %p61 = scmp.eq.s32.totalorder %s20, 0
      %p62 = por %p60, %p61
      %p63 = scmp.ne.s32.totalorder %s51, %s52
      %p64 = scmp.eq.s32.totalorder %s21, 1
      %p65 = por %p63, %p64
      %p67 = scmp.ne.s32.totalorder %s52, %s66
      %p68 = scmp.eq.s32.totalorder %s21, 0
      %p69 = por %p67, %p68
      %s70 = ssub.s32 %s15, %s22
      %p71 = scmp.eq.s32.totalorder %s70, 0
      %s73 = sadd.s32 %s72, 1
      %s74 = scalar_select %p71, %s72, %s73
      %p77 = pneg %p71
      %p78 = scmp.eq.s32.totalorder %s15, 1
      %p79 = por %p77, %p78
      %p80 = scmp.ne.s32.totalorder %s72, %s75
      %p81 = scmp.eq.s32.totalorder %s15, 0
      %p82 = por %p80, %p81
      %p83 = scmp.ne.s32.totalorder %s72, %s75
      %p84 = scmp.eq.s32.totalorder %s20, 1
      %p85 = por %p83, %p84
      %p86 = scmp.ne.s32.totalorder %s75, %s76
      %p87 = scmp.eq.s32.totalorder %s20, 0
      %p88 = por %p86, %p87
      %p89 = scmp.ne.s32.totalorder %s75, %s76
      %p90 = scmp.eq.s32.totalorder %s21, 1
      %p91 = por %p89, %p90
      %p93 = scmp.ne.s32.totalorder %s76, %s92
      %p94 = scmp.eq.s32.totalorder %s21, 0
      %p95 = por %p93, %p94
      %p96 = scmp.le.s32.totalorder 1, %s15
      %p97 = scmp.lt.s32.totalorder %s15, 3
      %p98 = pnand %p96, %p97
      %p99 = pneg %p98
      // Predicated region
      $region9: #{tpu_custom_call.1} parent=5 // pred_check
        _
      $region10: #{tpu_custom_call.1} parent=5 // pred_check_branch
        %101 = sbr.rel (%p98) target = $region12
      $region11: #{tpu_custom_call.1} parent=5 // pred_region
        %s102 = ssub.s32 %s15, 1
        // Predicated region
        $region13: #{tpu_custom_call.1} parent=11 // pred_check
          %p103 = pneg %p62
        $region14: #{tpu_custom_call.1} parent=11 // pred_check_branch
          %105 = sbr.rel (%p103) target = $region16
        $region15: #{tpu_custom_call.1} parent=11 // pred_region
          %s107 = ssub.s32 128, 128
          %108 = vsyncadd [#allocation6], %s107
          %s110 = sshll.u32 [#allocation5], 4
          %s111 = int_to_ptr.vmem [resolvable:$true] %s110
          %113 = dma.hbm_to_vmem [thread:$0]  %s1, 128, %s111, [#allocation6]
        $region16: #{tpu_custom_call.1} parent=11 // pred_fallthru
          _
      $region12: #{tpu_custom_call.1} parent=5 // pred_fallthru
        _
      %p114 = scmp.lt.s32.totalorder %s15, 2
      // Predicated region
      $region17: #{tpu_custom_call.1} parent=5 // pred_check
        %p115 = pneg %p114
      $region18: #{tpu_custom_call.1} parent=5 // pred_check_branch
        %117 = sbr.rel (%p115) target = $region20
      $region19: #{tpu_custom_call.1} parent=5 // pred_region
        // Predicated region
        $region21: #{tpu_custom_call.1} parent=19 // pred_check
          %p118 = pneg %p35
        $region22: #{tpu_custom_call.1} parent=19 // pred_check_branch
          %120 = sbr.rel (%p118) target = $region24
        $region23: #{tpu_custom_call.1} parent=19 // pred_region
          %s121 = sand.u32 %s25, 1
          %s122 = scalar_lea.sflag [#allocation3], %s121
          %s123 = sand.u32 %s25, 1
          %s124 = smul.addr %s123, 8
          %s125 = scalar_lea.vmem [#allocation2], %s124
          %s127 = ssub.s32 128, 128
          %128 = vsyncadd %s122, %s127
          %s129 = smul.addr %s15, 128
          %s130 = scalar_lea.hbm %s0, %s129
          %s132 = sshll.u32 %s125, 4
          %s133 = int_to_ptr.vmem [resolvable:$true] %s132
          %135 = dma.hbm_to_vmem [thread:$0]  %s130, 128, %s133, %s122
        $region24: #{tpu_custom_call.1} parent=19 // pred_fallthru
          _
      $region20: #{tpu_custom_call.1} parent=5 // pred_fallthru
        _
      %p136 = scmp.le.s32.totalorder 1, %s15
      %p137 = scmp.lt.s32.totalorder %s15, 3
      %p138 = pnand %p136, %p137
      %p139 = pneg %p138
      // Predicated region
      $region25: #{tpu_custom_call.1} parent=5 // pred_check
        _
      $region26: #{tpu_custom_call.1} parent=5 // pred_check_branch
        %141 = sbr.rel (%p138) target = $region28
      $region27: #{tpu_custom_call.1} parent=5 // pred_region
        %s142 = ssub.s32 %s15, 1
        %s143 = sand.u32 %s28, 1
        %s144 = scalar_lea.sflag [#allocation3], %s143
        %s145 = sand.u32 %s28, 1
        %s146 = smul.addr %s145, 8
        %s147 = scalar_lea.vmem [#allocation2], %s146
        // Predicated region
        $region29: #{tpu_custom_call.1} parent=27 // pred_check
          %p148 = pneg %p41
        $region30: #{tpu_custom_call.1} parent=27 // pred_check_branch
          %150 = sbr.rel (%p148) target = $region32
        $region31: #{tpu_custom_call.1} parent=27 // pred_region
          %151 = dma.done %s144, 128
        $region32: #{tpu_custom_call.1} parent=27 // pred_fallthru
          _
        // Predicated region
        $region33: #{tpu_custom_call.1} parent=27 // pred_check
          %p152 = pneg %p62
        $region34: #{tpu_custom_call.1} parent=27 // pred_check_branch
          %154 = sbr.rel (%p152) target = $region36
        $region35: #{tpu_custom_call.1} parent=27 // pred_region
          %155 = dma.done [#allocation6], 128
        $region36: #{tpu_custom_call.1} parent=27 // pred_fallthru
          _
        %s156 = sand.u32 %s28, 1
        %s157 = scalar_lea.sflag [#allocation3], %s156
        %s158 = sand.u32 %s28, 1
        %s159 = smul.addr %s158, 8
        %s160 = scalar_lea.vmem [#allocation2], %s159
        %p161 = pneg %p41
        %p162 = pneg %p38
        %p163 = pneg %p62
        %p164 = pneg %p59
        %p165 = pneg %p88
        %p166 = pneg %p85
        %s167 = sand.u32 %s75, 1
        %s168 = scalar_lea.sflag [#allocation4], %s167
        %s169 = sand.u32 %s75, 1
        %s170 = smul.addr %s169, 8
        %s171 = scalar_lea.vmem [#allocation7], %s170
        %v172 = vld [vmem:[%s147] sm:$0xff]
        %v173 = vld [vmem:[#allocation5] sm:$0xff]
        %v174 = vadd.f32 %v172, %v173
        %175 = vst [vmem:[%s171] sm:$0xff] %v174
        %s176 = sand.u32 %s75, 1
        %s177 = scalar_lea.sflag [#allocation4], %s176
        %s178 = sand.u32 %s75, 1
        %s179 = smul.addr %s178, 8
        %s180 = scalar_lea.vmem [#allocation7], %s179
        // Predicated region
        $region37: #{tpu_custom_call.1} parent=27 // pred_check
          %p181 = pneg %p85
        $region38: #{tpu_custom_call.1} parent=27 // pred_check_branch
          %183 = sbr.rel (%p181) target = $region40
        $region39: #{tpu_custom_call.1} parent=27 // pred_region
          %s185 = ssub.s32 128, 128
          %186 = vsyncadd %s177, %s185
          %s187 = smul.addr %s20, 128
          %s188 = scalar_lea.hbm %s2, %s187
          %s190 = sshll.u32 %s180, 4
          %s191 = int_to_ptr.vmem [resolvable:$true] %s190
          %193 = dma.vmem_to_hbm [thread:$0]  %s191, 128, %s188, %s177
        $region40: #{tpu_custom_call.1} parent=27 // pred_fallthru
          _
      $region28: #{tpu_custom_call.1} parent=5 // pred_fallthru
        _
      %p194 = scmp.le.s32.totalorder 2, %s15
      // Predicated region
      $region41: #{tpu_custom_call.1} parent=5 // pred_check
        %p195 = pneg %p194
      $region42: #{tpu_custom_call.1} parent=5 // pred_check_branch
        %197 = sbr.rel (%p195) target = $region44
      $region43: #{tpu_custom_call.1} parent=5 // pred_region
        %s198 = ssub.s32 %s15, 2
        // Predicated region
        $region45: #{tpu_custom_call.1} parent=43 // pred_check
          %p199 = pneg %p91
        $region46: #{tpu_custom_call.1} parent=43 // pred_check_branch
          %201 = sbr.rel (%p199) target = $region48
        $region47: #{tpu_custom_call.1} parent=43 // pred_region
          %s202 = sand.u32 %s76, 1
          %s203 = scalar_lea.sflag [#allocation4], %s202
          %s204 = sand.u32 %s76, 1
          %s205 = smul.addr %s204, 8
          %s206 = scalar_lea.vmem [#allocation7], %s205
          %207 = dma.done %s203, 128
        $region48: #{tpu_custom_call.1} parent=43 // pred_fallthru
          _
      $region44: #{tpu_custom_call.1} parent=5 // pred_fallthru
        _
    $region6: #{tpu_custom_call.1} parent=1 // loop_footer
      %s19 = sadd.s32 1, %s15
    $region7: #{tpu_custom_call.1} parent=1 // loop_footer_branch
      %14 = sbr.rel target = $region3
    $region8: #{tpu_custom_call.1} parent=1 // loop_exit
      _
    %208 = vsyncpa [#allocation3], 1
    %s209 = scalar_lea.sflag [#allocation3], 1
    %210 = vsyncpa %s209, 1
    %211 = vsyncpa [#allocation6], 1
    %212 = vsyncpa [#allocation4], 1
    %s213 = scalar_lea.sflag [#allocation4], 1
    %214 = vsyncpa %s213, 1

// kernel: tpu_custom_call.1
$region0: #{tpu_custom_call.1}
  #allocation0 [shape = 'u32[]', space=smem, size = 0x4, offset = 0x4, fixed_abs, tag = 'smem constant byte address 0x4 - core index']
  #allocation1 [shape = 'u32[144,128]{1,0:T(1,128)}', space=vmem, size = 0x12000, scoped, tag = 'internal scratch']
  %s0 = inlined_call_operand.vmem [shape: bf16[16,64], index: 0, kind: input, shape index: {}]
  %s1 = inlined_call_operand.vmem [shape: bf16[16,32], index: 1, kind: input, shape index: {}]
  %s2 = inlined_call_operand.vmem [shape: bf16[64,32], index: 2, kind: input, shape index: {}]
  %s3 = inlined_call_operand.vmem [shape: bf16[1,32], index: 3, kind: input, shape index: {}]
  %s4 = inlined_call_operand.vmem [shape: bf16[32,128], index: 4, kind: input, shape index: {}]
  %s5 = inlined_call_operand.vmem [shape: bf16[1,128], index: 5, kind: input, shape index: {}]
  %s6 = inlined_call_operand.vmem [shape: bf16[128,32], index: 6, kind: input, shape index: {}]
  %s7 = inlined_call_operand.vmem [shape: bf16[1,32], index: 7, kind: input, shape index: {}]
  %s8 = inlined_call_operand.vmem [shape: bf16[1,32], index: 8, kind: input, shape index: {}]
  %s9 = inlined_call_operand.vmem [shape: bf16[1,32], index: 9, kind: input, shape index: {}]
  %s10 = inlined_call_operand.hbm [shape: bf16[16,32], index: 10, kind: output, shape index: {}]
  %s11 = sld [smem:[#allocation0]]
  $region73: #{tpu_custom_call.1} parent=0
    _
  %s13 = ssub.s32 1, %s11
  %s14 = scalar_select 0, %s13, %s11
  $region1: #{tpu_custom_call.1} parent=0
    #allocation2 [shape = 'u8[4096]{0}', space=vmem, size = 0x1000, scoped, tag = 'output window, operand 0']
    #allocation3 [shape = 's32[2]{0}', space=sflag, size = 0x8, scoped, tag = 'scoped memory for tpu_custom_call.1']
    %15 = vsyncpa [#allocation3], 0
    %s16 = scalar_lea.sflag [#allocation3], 1
    %17 = vsyncpa %s16, 0
    loop: start=0, step=1, limit=4
    $region2: #{tpu_custom_call.1} parent=1 // loop_pre_header
      _
    $region3: #{tpu_custom_call.1} parent=1 // loop_header
      %s19 = sphi 0, %s23
      %p20 = scmp.ge.s32.totalorder %s19, 4
      %s29 = sphi 0, %s31
      %s32 = sphi 0, %s29
      %s33 = sphi 0, %s32
      %s49 = sphi 0, %s33
      %s55 = sphi 0, %s57
      %s58 = sphi 0, %s55
      %s59 = sphi 0, %s58
      %s75 = sphi 0, %s59
      %s79 = sphi 0, %s79
      %s81 = sphi 0, %s79
      %s82 = sphi 0, %s81
      %s96 = sphi 0, %s82
      %s100 = sphi 0, %s100
      %s102 = sphi 0, %s100
      %s103 = sphi 0, %s102
      %s117 = sphi 0, %s103
      %s121 = sphi 0, %s121
      %s123 = sphi 0, %s121
      %s124 = sphi 0, %s123
      %s138 = sphi 0, %s124
      %s142 = sphi 0, %s142
      %s144 = sphi 0, %s142
      %s145 = sphi 0, %s144
      %s159 = sphi 0, %s145
      %s163 = sphi 0, %s163
      %s165 = sphi 0, %s163
      %s166 = sphi 0, %s165
      %s180 = sphi 0, %s166
      %s184 = sphi 0, %s184
      %s186 = sphi 0, %s184
      %s187 = sphi 0, %s186
      %s201 = sphi 0, %s187
      %s205 = sphi 0, %s205
      %s207 = sphi 0, %s205
      %s208 = sphi 0, %s207
      %s222 = sphi 0, %s208
      %s226 = sphi 0, %s226
      %s228 = sphi 0, %s226
      %s229 = sphi 0, %s228
      %s243 = sphi 0, %s229
      %s249 = sphi 0, %s251
      %s252 = sphi 0, %s249
      %s253 = sphi 0, %s252
      %s269 = sphi 0, %s253
    $region4: #{tpu_custom_call.1} parent=1 // loop_header_branch
      %22 = sbr.rel (%p20) target = $region8
    $region5: #{tpu_custom_call.1} parent=1 // loop_body
      %s24 = ssub.s32 %s19, 1
      %s25 = ssub.s32 %s19, 2
      %s26 = sadd.s32 %s19, 1
      %s27 = ssub.s32 %s19, %s26
      %p28 = scmp.eq.s32.totalorder %s27, 0
      %s30 = sadd.s32 %s29, 1
      %s31 = scalar_select %p28, %s29, %s30
      %p34 = pneg %p28
      %p35 = scmp.eq.s32.totalorder %s19, 1
      %p36 = por %p34, %p35
      %p37 = scmp.ne.s32.totalorder %s29, %s32
      %p38 = scmp.eq.s32.totalorder %s19, 0
      %p39 = por %p37, %p38
      %p40 = scmp.ne.s32.totalorder %s29, %s32
      %p41 = scmp.eq.s32.totalorder %s24, 1
      %p42 = por %p40, %p41
      %p43 = scmp.ne.s32.totalorder %s32, %s33
      %p44 = scmp.eq.s32.totalorder %s24, 0
      %p45 = por %p43, %p44
      %p46 = scmp.ne.s32.totalorder %s32, %s33
      %p47 = scmp.eq.s32.totalorder %s25, 1
      %p48 = por %p46, %p47
      %p50 = scmp.ne.s32.totalorder %s33, %s49
      %p51 = scmp.eq.s32.totalorder %s25, 0
      %p52 = por %p50, %p51
      %s53 = ssub.s32 %s19, %s26
      %p54 = scmp.eq.s32.totalorder %s53, 0
      %s56 = sadd.s32 %s55, 1
      %s57 = scalar_select %p54, %s55, %s56
      %p60 = pneg %p54
      %p61 = scmp.eq.s32.totalorder %s19, 1
      %p62 = por %p60, %p61
      %p63 = scmp.ne.s32.totalorder %s55, %s58
      %p64 = scmp.eq.s32.totalorder %s19, 0
      %p65 = por %p63, %p64
      %p66 = scmp.ne.s32.totalorder %s55, %s58
      %p67 = scmp.eq.s32.totalorder %s24, 1
      %p68 = por %p66, %p67
      %p69 = scmp.ne.s32.totalorder %s58, %s59
      %p70 = scmp.eq.s32.totalorder %s24, 0
      %p71 = por %p69, %p70
      %p72 = scmp.ne.s32.totalorder %s58, %s59
      %p73 = scmp.eq.s32.totalorder %s25, 1
      %p74 = por %p72, %p73
      %p76 = scmp.ne.s32.totalorder %s59, %s75
      %p77 = scmp.eq.s32.totalorder %s25, 0
      %p78 = por %p76, %p77
      %s80 = sadd.s32 %s79, 1
      %p83 = scmp.eq.s32.totalorder %s19, 1
      %p84 = scmp.ne.s32.totalorder %s79, %s81
      %p85 = scmp.eq.s32.totalorder %s19, 0
      %p86 = por %p84, %p85
      %p87 = scmp.ne.s32.totalorder %s79, %s81
      %p88 = scmp.eq.s32.totalorder %s24, 1
      %p89 = por %p87, %p88
      %p90 = scmp.ne.s32.totalorder %s81, %s82
      %p91 = scmp.eq.s32.totalorder %s24, 0
      %p92 = por %p90, %p91
      %p93 = scmp.ne.s32.totalorder %s81, %s82
      %p94 = scmp.eq.s32.totalorder %s25, 1
      %p95 = por %p93, %p94
      %p97 = scmp.ne.s32.totalorder %s82, %s96
      %p98 = scmp.eq.s32.totalorder %s25, 0
      %p99 = por %p97, %p98
      %s101 = sadd.s32 %s100, 1
      %p104 = scmp.eq.s32.totalorder %s19, 1
      %p105 = scmp.ne.s32.totalorder %s100, %s102
      %p106 = scmp.eq.s32.totalorder %s19, 0
      %p107 = por %p105, %p106
      %p108 = scmp.ne.s32.totalorder %s100, %s102
      %p109 = scmp.eq.s32.totalorder %s24, 1
      %p110 = por %p108, %p109
      %p111 = scmp.ne.s32.totalorder %s102, %s103
      %p112 = scmp.eq.s32.totalorder %s24, 0
      %p113 = por %p111, %p112
      %p114 = scmp.ne.s32.totalorder %s102, %s103
      %p115 = scmp.eq.s32.totalorder %s25, 1
      %p116 = por %p114, %p115
      %p118 = scmp.ne.s32.totalorder %s103, %s117
      %p119 = scmp.eq.s32.totalorder %s25, 0
      %p120 = por %p118, %p119
      %s122 = sadd.s32 %s121, 1
      %p125 = scmp.eq.s32.totalorder %s19, 1
      %p126 = scmp.ne.s32.totalorder %s121, %s123
      %p127 = scmp.eq.s32.totalorder %s19, 0
      %p128 = por %p126, %p127
      %p129 = scmp.ne.s32.totalorder %s121, %s123
      %p130 = scmp.eq.s32.totalorder %s24, 1
      %p131 = por %p129, %p130
      %p132 = scmp.ne.s32.totalorder %s123, %s124
      %p133 = scmp.eq.s32.totalorder %s24, 0
      %p134 = por %p132, %p133
      %p135 = scmp.ne.s32.totalorder %s123, %s124
      %p136 = scmp.eq.s32.totalorder %s25, 1
      %p137 = por %p135, %p136
      %p139 = scmp.ne.s32.totalorder %s124, %s138
      %p140 = scmp.eq.s32.totalorder %s25, 0
      %p141 = por %p139, %p140
      %s143 = sadd.s32 %s142, 1
      %p146 = scmp.eq.s32.totalorder %s19, 1
      %p147 = scmp.ne.s32.totalorder %s142, %s144
      %p148 = scmp.eq.s32.totalorder %s19, 0
      %p149 = por %p147, %p148
      %p150 = scmp.ne.s32.totalorder %s142, %s144
      %p151 = scmp.eq.s32.totalorder %s24, 1
      %p152 = por %p150, %p151
      %p153 = scmp.ne.s32.totalorder %s144, %s145
      %p154 = scmp.eq.s32.totalorder %s24, 0
      %p155 = por %p153, %p154
      %p156 = scmp.ne.s32.totalorder %s144, %s145
      %p157 = scmp.eq.s32.totalorder %s25, 1
      %p158 = por %p156, %p157
      %p160 = scmp.ne.s32.totalorder %s145, %s159
      %p161 = scmp.eq.s32.totalorder %s25, 0
      %p162 = por %p160, %p161
      %s164 = sadd.s32 %s163, 1
      %p167 = scmp.eq.s32.totalorder %s19, 1
      %p168 = scmp.ne.s32.totalorder %s163, %s165
      %p169 = scmp.eq.s32.totalorder %s19, 0
      %p170 = por %p168, %p169
      %p171 = scmp.ne.s32.totalorder %s163, %s165
      %p172 = scmp.eq.s32.totalorder %s24, 1
      %p173 = por %p171, %p172
      %p174 = scmp.ne.s32.totalorder %s165, %s166
      %p175 = scmp.eq.s32.totalorder %s24, 0
      %p176 = por %p174, %p175
      %p177 = scmp.ne.s32.totalorder %s165, %s166
      %p178 = scmp.eq.s32.totalorder %s25, 1
      %p179 = por %p177, %p178
      %p181 = scmp.ne.s32.totalorder %s166, %s180
      %p182 = scmp.eq.s32.totalorder %s25, 0
      %p183 = por %p181, %p182
      %s185 = sadd.s32 %s184, 1
      %p188 = scmp.eq.s32.totalorder %s19, 1
      %p189 = scmp.ne.s32.totalorder %s184, %s186
      %p190 = scmp.eq.s32.totalorder %s19, 0
      %p191 = por %p189, %p190
      %p192 = scmp.ne.s32.totalorder %s184, %s186
      %p193 = scmp.eq.s32.totalorder %s24, 1
      %p194 = por %p192, %p193
      %p195 = scmp.ne.s32.totalorder %s186, %s187
      %p196 = scmp.eq.s32.totalorder %s24, 0
      %p197 = por %p195, %p196
      %p198 = scmp.ne.s32.totalorder %s186, %s187
      %p199 = scmp.eq.s32.totalorder %s25, 1
      %p200 = por %p198, %p199
      %p202 = scmp.ne.s32.totalorder %s187, %s201
      %p203 = scmp.eq.s32.totalorder %s25, 0
      %p204 = por %p202, %p203
      %s206 = sadd.s32 %s205, 1
      %p209 = scmp.eq.s32.totalorder %s19, 1
      %p210 = scmp.ne.s32.totalorder %s205, %s207
      %p211 = scmp.eq.s32.totalorder %s19, 0
      %p212 = por %p210, %p211
      %p213 = scmp.ne.s32.totalorder %s205, %s207
      %p214 = scmp.eq.s32.totalorder %s24, 1
      %p215 = por %p213, %p214
      %p216 = scmp.ne.s32.totalorder %s207, %s208
      %p217 = scmp.eq.s32.totalorder %s24, 0
      %p218 = por %p216, %p217
      %p219 = scmp.ne.s32.totalorder %s207, %s208
      %p220 = scmp.eq.s32.totalorder %s25, 1
      %p221 = por %p219, %p220
      %p223 = scmp.ne.s32.totalorder %s208, %s222
      %p224 = scmp.eq.s32.totalorder %s25, 0
      %p225 = por %p223, %p224
      %s227 = sadd.s32 %s226, 1
      %p230 = scmp.eq.s32.totalorder %s19, 1
      %p231 = scmp.ne.s32.totalorder %s226, %s228
      %p232 = scmp.eq.s32.totalorder %s19, 0
      %p233 = por %p231, %p232
      %p234 = scmp.ne.s32.totalorder %s226, %s228
      %p235 = scmp.eq.s32.totalorder %s24, 1
      %p236 = por %p234, %p235
      %p237 = scmp.ne.s32.totalorder %s228, %s229
      %p238 = scmp.eq.s32.totalorder %s24, 0
      %p239 = por %p237, %p238
      %p240 = scmp.ne.s32.totalorder %s228, %s229
      %p241 = scmp.eq.s32.totalorder %s25, 1
      %p242 = por %p240, %p241
      %p244 = scmp.ne.s32.totalorder %s229, %s243
      %p245 = scmp.eq.s32.totalorder %s25, 0
      %p246 = por %p244, %p245
      %s247 = ssub.s32 %s19, %s26
      %p248 = scmp.eq.s32.totalorder %s247, 0
      %s250 = sadd.s32 %s249, 1
      %s251 = scalar_select %p248, %s249, %s250
      %p254 = pneg %p248
      %p255 = scmp.eq.s32.totalorder %s19, 1
      %p256 = por %p254, %p255
      %p257 = scmp.ne.s32.totalorder %s249, %s252
      %p258 = scmp.eq.s32.totalorder %s19, 0
      %p259 = por %p257, %p258
      %p260 = scmp.ne.s32.totalorder %s249, %s252
      %p261 = scmp.eq.s32.totalorder %s24, 1
      %p262 = por %p260, %p261
      %p263 = scmp.ne.s32.totalorder %s252, %s253
      %p264 = scmp.eq.s32.totalorder %s24, 0
      %p265 = por %p263, %p264
      %p266 = scmp.ne.s32.totalorder %s252, %s253
      %p267 = scmp.eq.s32.totalorder %s25, 1
      %p268 = por %p266, %p267
      %p270 = scmp.ne.s32.totalorder %s253, %s269
      %p271 = scmp.eq.s32.totalorder %s25, 0
      %p272 = por %p270, %p271
      %p273 = scmp.le.s32.totalorder 1, %s19
      %p274 = scmp.lt.s32.totalorder %s19, 3
      %p275 = pnand %p273, %p274
      %p276 = pneg %p275
      // Predicated region
      $region9: #{tpu_custom_call.1} parent=5 // pred_check
        _
      $region10: #{tpu_custom_call.1} parent=5 // pred_check_branch
        %278 = sbr.rel (%p275) target = $region12
      $region11: #{tpu_custom_call.1} parent=5 // pred_region
        %s279 = ssub.s32 %s19, 1
        // Predicated region
        $region13: #{tpu_custom_call.1} parent=11 // pred_check
          %p280 = pneg %p92
        $region14: #{tpu_custom_call.1} parent=11 // pred_check_branch
          %282 = sbr.rel (%p280) target = $region16
        $region15: #{tpu_custom_call.1} parent=11 // pred_region
          _
        $region16: #{tpu_custom_call.1} parent=11 // pred_fallthru
          _
        // Predicated region
        $region17: #{tpu_custom_call.1} parent=11 // pred_check
          %p283 = pneg %p113
        $region18: #{tpu_custom_call.1} parent=11 // pred_check_branch
          %285 = sbr.rel (%p283) target = $region20
        $region19: #{tpu_custom_call.1} parent=11 // pred_region
          _
        $region20: #{tpu_custom_call.1} parent=11 // pred_fallthru
          _
        // Predicated region
        $region21: #{tpu_custom_call.1} parent=11 // pred_check
          %p286 = pneg %p134
        $region22: #{tpu_custom_call.1} parent=11 // pred_check_branch
          %288 = sbr.rel (%p286) target = $region24
        $region23: #{tpu_custom_call.1} parent=11 // pred_region
          _
        $region24: #{tpu_custom_call.1} parent=11 // pred_fallthru
          _
        // Predicated region
        $region25: #{tpu_custom_call.1} parent=11 // pred_check
          %p289 = pneg %p155
        $region26: #{tpu_custom_call.1} parent=11 // pred_check_branch
          %291 = sbr.rel (%p289) target = $region28
        $region27: #{tpu_custom_call.1} parent=11 // pred_region
          _
        $region28: #{tpu_custom_call.1} parent=11 // pred_fallthru
          _
        // Predicated region
        $region29: #{tpu_custom_call.1} parent=11 // pred_check
          %p292 = pneg %p176
        $region30: #{tpu_custom_call.1} parent=11 // pred_check_branch
          %294 = sbr.rel (%p292) target = $region32
        $region31: #{tpu_custom_call.1} parent=11 // pred_region
          _
        $region32: #{tpu_custom_call.1} parent=11 // pred_fallthru
          _
        // Predicated region
        $region33: #{tpu_custom_call.1} parent=11 // pred_check
          %p295 = pneg %p197
        $region34: #{tpu_custom_call.1} parent=11 // pred_check_branch
          %297 = sbr.rel (%p295) target = $region36
        $region35: #{tpu_custom_call.1} parent=11 // pred_region
          _
        $region36: #{tpu_custom_call.1} parent=11 // pred_fallthru
          _
        // Predicated region
        $region37: #{tpu_custom_call.1} parent=11 // pred_check
          %p298 = pneg %p218
        $region38: #{tpu_custom_call.1} parent=11 // pred_check_branch
          %300 = sbr.rel (%p298) target = $region40
        $region39: #{tpu_custom_call.1} parent=11 // pred_region
          _
        $region40: #{tpu_custom_call.1} parent=11 // pred_fallthru
          _
        // Predicated region
        $region41: #{tpu_custom_call.1} parent=11 // pred_check
          %p301 = pneg %p239
        $region42: #{tpu_custom_call.1} parent=11 // pred_check_branch
          %303 = sbr.rel (%p301) target = $region44
        $region43: #{tpu_custom_call.1} parent=11 // pred_region
          _
        $region44: #{tpu_custom_call.1} parent=11 // pred_fallthru
          _
      $region12: #{tpu_custom_call.1} parent=5 // pred_fallthru
        _
      %p304 = scmp.lt.s32.totalorder %s19, 2
      // Predicated region
      $region45: #{tpu_custom_call.1} parent=5 // pred_check
        %p305 = pneg %p304
      $region46: #{tpu_custom_call.1} parent=5 // pred_check_branch
        %307 = sbr.rel (%p305) target = $region48
      $region47: #{tpu_custom_call.1} parent=5 // pred_region
        // Predicated region
        $region49: #{tpu_custom_call.1} parent=47 // pred_check
          %p308 = pneg %p39
        $region50: #{tpu_custom_call.1} parent=47 // pred_check_branch
          %310 = sbr.rel (%p308) target = $region52
        $region51: #{tpu_custom_call.1} parent=47 // pred_region
          %p311 = scmp.lt.s32.totalorder %s19, 1
          %s312 = scalar_select %p311, %s19, 1
          %s313 = smul.addr %s312, 4
          %s314 = scalar_lea.vmem %s0, %s313
        $region52: #{tpu_custom_call.1} parent=47 // pred_fallthru
          _
        // Predicated region
        $region53: #{tpu_custom_call.1} parent=47 // pred_check
          %p315 = pneg %p65
        $region54: #{tpu_custom_call.1} parent=47 // pred_check_branch
          %317 = sbr.rel (%p315) target = $region56
        $region55: #{tpu_custom_call.1} parent=47 // pred_region
          %p318 = scmp.lt.s32.totalorder %s19, 1
          %s319 = scalar_select %p318, %s19, 1
          %s320 = smul.addr %s319, 4
          %s321 = scalar_lea.vmem %s1, %s320
        $region56: #{tpu_custom_call.1} parent=47 // pred_fallthru
          _
      $region48: #{tpu_custom_call.1} parent=5 // pred_fallthru
        _
      %p322 = scmp.le.s32.totalorder 1, %s19
      %p323 = scmp.lt.s32.totalorder %s19, 3
      %p324 = pnand %p322, %p323
      %p325 = pneg %p324
      // Predicated region
      $region57: #{tpu_custom_call.1} parent=5 // pred_check
        _
      $region58: #{tpu_custom_call.1} parent=5 // pred_check_branch
        %327 = sbr.rel (%p324) target = $region60
      $region59: #{tpu_custom_call.1} parent=5 // pred_region
        %s328 = ssub.s32 %s19, 1
        %p329 = scmp.lt.s32.totalorder %s24, 1
        %s330 = scalar_select %p329, %s24, 1
        %s331 = smul.addr %s330, 4
        %s332 = scalar_lea.vmem %s0, %s331
        %p333 = pneg %p45
        %p334 = pneg %p42
        %p335 = scmp.lt.s32.totalorder %s24, 1
        %s336 = scalar_select %p335, %s24, 1
        %s337 = smul.addr %s336, 4
        %s338 = scalar_lea.vmem %s1, %s337
        %p339 = pneg %p71
        %p340 = pneg %p68
        %p341 = pneg %p92
        %p342 = pneg %p89
        %p343 = pneg %p113
        %p344 = pneg %p110
        %p345 = pneg %p134
        %p346 = pneg %p131
        %p347 = pneg %p155
        %p348 = pneg %p152
        %p349 = pneg %p176
        %p350 = pneg %p173
        %p351 = pneg %p197
        %p352 = pneg %p194
        %p353 = pneg %p218
        %p354 = pneg %p215
        %p355 = pneg %p239
        %p356 = pneg %p236
        %p357 = pneg %p265
        %p358 = pneg %p262
        %s359 = sand.u32 %s252, 1
        %s360 = scalar_lea.sflag [#allocation3], %s359
        %s361 = sand.u32 %s252, 1
        %s362 = smul.addr %s361, 4
        %s363 = scalar_lea.vmem [#allocation2], %s362
        %p364 = scmp.lt.s32.totalorder %s24, 1
        %s365 = scalar_select %p364, %s24, 1
        %s366 = smul.addr %s365, 4
        %s367 = scalar_lea.vmem %s0, %s366
        %p368 = scmp.lt.s32.totalorder %s24, 1
        %s369 = scalar_select %p368, %s24, 1
        %s370 = smul.addr %s369, 4
        %s371 = scalar_lea.vmem %s1, %s370
        %v373 = vld [vmem:[%s367] sm:$0xf]
        %v374 = vld [vmem:[%s2] sm:$0xf]
        %v375 = vld [vmem:[%s2 + $0x4] sm:$0xf]
        %v376 = vld [vmem:[%s2 + $0x8] sm:$0xf]
        %v377 = vld [vmem:[%s2 + $0xc] sm:$0xf]
        %v378 = vld [vmem:[%s2 + $0x10] sm:$0xf]
        %v379 = vld [vmem:[%s2 + $0x14] sm:$0xf]
        %v380 = vld [vmem:[%s2 + $0x18] sm:$0xf]
        %v381 = vld [vmem:[%s2 + $0x1c] sm:$0xf]
        %v382 = vld [vmem:[%s3] sm:$0x1]
        %v383 = vunpack.c.l.bf16 %v382
        %v384 = vlaneseq
        %v385 = vshrl.u32 %v384, 7
        %v386 = vsub.s32 0, %v385
        %v387 = vrot.slane %v383, %v386
        %v396 = vunpack.c.l.b16 %v374
        %v397 = vunpack.c.l.b16 %v375
        %v398 = vunpack.c.l.b16 %v376
        %v399 = vunpack.c.l.b16 %v377
        %v400 = vunpack.c.l.b16 %v378
        %v401 = vunpack.c.l.b16 %v379
        %v402 = vunpack.c.l.b16 %v380
        %v403 = vunpack.c.l.b16 %v381
        %v404 = vpack.c.b16 %v397, %v396
        %v405 = vpack.c.b16 %v399, %v398
        %v406 = vpack.c.b16 %v401, %v400
        %v407 = vpack.c.b16 %v403, %v402
        %vm412 = vcmask 523264
        %v414 = vsel %vm412, %v373, 0
        %416 = vmatprep.subr.bf16.mxu0 0
        %417 = vmatpush1.bf16.msra.mxu0 0
        %418 = vmatprep.subr.bf16.mxu0 0
        %419 = vmatpush1.bf16.msra.mxu0 0
        %420 = vmatprep.subr.bf16.mxu0 0
        %421 = vmatpush1.bf16.msra.mxu0 0
        %422 = vmatprep.subr.bf16.mxu0 0
        %423 = vmatpush1.bf16.msra.mxu0 0
        %424 = vmatprep.subr.bf16.mxu0 0
        %425 = vmatpush1.bf16.msra.mxu0 %v407
        %426 = vmatprep.subr.bf16.mxu0 0
        %427 = vmatpush1.bf16.msra.mxu0 %v406
        %428 = vmatprep.subr.bf16.mxu0 0
        %429 = vmatpush1.bf16.msra.mxu0 %v405
        %430 = vmatprep.subr.bf16.mxu0 0
        %431 = vmatpush1.bf16.msra.mxu0 %v404
        %432 = vmatprep.subr.bf16.mxu0 0
        %433 = vmatpush2.bf16.msra.mxu0 0
        %434 = vmatprep.subr.bf16.mxu0 0
        %435 = vmatpush2.bf16.msra.mxu0 0
        %436 = vmatprep.subr.bf16.mxu0 0
        %437 = vmatpush2.bf16.msra.mxu0 0
        %438 = vmatprep.subr.bf16.mxu0 0
        %439 = vmatpush2.bf16.msra.mxu0 0
        %440 = vmatprep.subr.bf16.mxu0 0
        %441 = vmatpush2.bf16.msra.mxu0 0
        %442 = vmatprep.subr.bf16.mxu0 0
        %443 = vmatpush2.bf16.msra.mxu0 0
        %444 = vmatprep.subr.bf16.mxu0 0
        %445 = vmatpush2.bf16.msra.mxu0 0
        %446 = vmatprep.subr.bf16.mxu0 0
        %447 = vmatpush2.bf16.msra.mxu0 0
        %448 = vmatprep.mubr.bf16.mxu0 0
        %449 = vmatmul.mubr.bf16.gmra.mxu0 %v414
        %v450 = vpop.f32.mrf.mxu0
        %v451 = vadd.f32 %v387, %v450
        %v452 = vpop.f32.mrf.mxu0
        %v453 = vpop.f32.mrf.mxu0
        %v454 = vpop.f32.mrf.mxu0
        %455 = vdwg.mxu0
        %v456 = vpack.c.bf16 %v451, %v451
        %v457 = vld [vmem:[%s4] sm:$0xf]
        %v458 = vld [vmem:[%s4 + $0x4] sm:$0xf]
        %v459 = vld [vmem:[%s4 + $0x8] sm:$0xf]
        %v460 = vld [vmem:[%s4 + $0xc] sm:$0xf]
        %v461 = vld [vmem:[%s5] sm:$0x1]
        %v462 = vunpack.c.l.bf16 %v461
        %v463 = vlaneseq
        %v464 = vshrl.u32 %v463, 7
        %v465 = vsub.s32 0, %v464
        %v466 = vrot.slane %v462, %v465
        %v471 = vunpack.c.l.b16 %v457
        %v472 = vunpack.c.l.b16 %v458
        %v473 = vunpack.c.l.b16 %v459
        %v474 = vunpack.c.l.b16 %v460
        %v475 = vpack.c.b16 %v472, %v471
        %v476 = vpack.c.b16 %v474, %v473
        %vm479 = vcmask 261120
        %v481 = vsel %vm479, %v456, 0
        %483 = vmatprep.subr.bf16.mxu0 0
        %484 = vmatpush1.bf16.msra.mxu0 0
        %485 = vmatprep.subr.bf16.mxu0 0
        %486 = vmatpush1.bf16.msra.mxu0 0
        %487 = vmatprep.subr.bf16.mxu0 0
        %488 = vmatpush1.bf16.msra.mxu0 0
        %489 = vmatprep.subr.bf16.mxu0 0
        %490 = vmatpush1.bf16.msra.mxu0 0
        %491 = vmatprep.subr.bf16.mxu0 0
        %492 = vmatpush1.bf16.msra.mxu0 0
        %493 = vmatprep.subr.bf16.mxu0 0
        %494 = vmatpush1.bf16.msra.mxu0 0
        %495 = vmatprep.subr.bf16.mxu0 0
        %496 = vmatpush1.bf16.msra.mxu0 %v476
        %497 = vmatprep.subr.bf16.mxu0 0
        %498 = vmatpush1.bf16.msra.mxu0 %v475
        %499 = vmatprep.subr.bf16.mxu0 0
        %500 = vmatpush2.bf16.msra.mxu0 0
        %501 = vmatprep.subr.bf16.mxu0 0
        %502 = vmatpush2.bf16.msra.mxu0 0
        %503 = vmatprep.subr.bf16.mxu0 0
        %504 = vmatpush2.bf16.msra.mxu0 0
        %505 = vmatprep.subr.bf16.mxu0 0
        %506 = vmatpush2.bf16.msra.mxu0 0
        %507 = vmatprep.subr.bf16.mxu0 0
        %508 = vmatpush2.bf16.msra.mxu0 0
        %509 = vmatprep.subr.bf16.mxu0 0
        %510 = vmatpush2.bf16.msra.mxu0 0
        %511 = vmatprep.subr.bf16.mxu0 0
        %512 = vmatpush2.bf16.msra.mxu0 0
        %513 = vmatprep.subr.bf16.mxu0 0
        %514 = vmatpush2.bf16.msra.mxu0 0
        %515 = vmatprep.mubr.bf16.mxu0 0
        %516 = vmatmul.mubr.bf16.gmra.mxu0 %v481
        %v517 = vpop.f32.mrf.mxu0
        %v518 = vadd.f32 %v466, %v517
        %v519 = vpop.f32.mrf.mxu0
        %v520 = vpop.f32.mrf.mxu0
        %v521 = vpop.f32.mrf.mxu0
        %522 = vdwg.mxu0
        %v523 = vmul.f32 %v518, 0.5
        %v524 = vmul.f32 %v518, 0.044715
        %v525 = vmul.f32 %v524, %v518
        %v526 = vmul.f32 %v525, %v518
        %v527 = vadd.f32 %v518, %v526
        %v528 = vmul.f32 %v527, 0.7978846
        %v529 = vtanh.pop %v528
        %v530 = vadd.f32 %v529, 1.0
        %v531 = vmul.f32 %v523, %v530
        %v532 = vpack.c.bf16 %v531, %v531
        %v533 = vld [vmem:[%s6] sm:$0xf]
        %v534 = vld [vmem:[%s6 + $0x4] sm:$0xf]
        %v535 = vld [vmem:[%s6 + $0x8] sm:$0xf]
        %v536 = vld [vmem:[%s6 + $0xc] sm:$0xf]
        %v537 = vld [vmem:[%s6 + $0x10] sm:$0xf]
        %v538 = vld [vmem:[%s6 + $0x14] sm:$0xf]
        %v539 = vld [vmem:[%s6 + $0x18] sm:$0xf]
        %v540 = vld [vmem:[%s6 + $0x1c] sm:$0xf]
        %v541 = vld [vmem:[%s6 + $0x20] sm:$0xf]
        %v542 = vld [vmem:[%s6 + $0x24] sm:$0xf]
        %v543 = vld [vmem:[%s6 + $0x28] sm:$0xf]
        %v544 = vld [vmem:[%s6 + $0x2c] sm:$0xf]
        %v545 = vld [vmem:[%s6 + $0x30] sm:$0xf]
        %v546 = vld [vmem:[%s6 + $0x34] sm:$0xf]
        %v547 = vld [vmem:[%s6 + $0x38] sm:$0xf]
        %v548 = vld [vmem:[%s6 + $0x3c] sm:$0xf]
        %v565 = vunpack.c.l.b16 %v533
        %v566 = vunpack.c.l.b16 %v534
        %v567 = vunpack.c.l.b16 %v535
        %v568 = vunpack.c.l.b16 %v536
        %v569 = vunpack.c.l.b16 %v537
        %v570 = vunpack.c.l.b16 %v538
        %v571 = vunpack.c.l.b16 %v539
        %v572 = vunpack.c.l.b16 %v540
        %v573 = vunpack.c.l.b16 %v541
        %v574 = vunpack.c.l.b16 %v542
        %v575 = vunpack.c.l.b16 %v543
        %v576 = vunpack.c.l.b16 %v544
        %v577 = vunpack.c.l.b16 %v545
        %v578 = vunpack.c.l.b16 %v546
        %v579 = vunpack.c.l.b16 %v547
        %v580 = vunpack.c.l.b16 %v548
        %v581 = vpack.c.b16 %v566, %v565
        %v582 = vpack.c.b16 %v568, %v567
        %v583 = vpack.c.b16 %v570, %v569
        %v584 = vpack.c.b16 %v572, %v571
        %v585 = vpack.c.b16 %v574, %v573
        %v586 = vpack.c.b16 %v576, %v575
        %v587 = vpack.c.b16 %v578, %v577
        %v588 = vpack.c.b16 %v580, %v579
        %597 = vmatprep.subr.bf16.mxu0 0
        %598 = vmatpush1.bf16.msra.mxu0 %v588
        %599 = vmatprep.subr.bf16.mxu0 0
        %600 = vmatpush1.bf16.msra.mxu0 %v587
        %601 = vmatprep.subr.bf16.mxu0 0
        %602 = vmatpush1.bf16.msra.mxu0 %v586
        %603 = vmatprep.subr.bf16.mxu0 0
        %604 = vmatpush1.bf16.msra.mxu0 %v585
        %605 = vmatprep.subr.bf16.mxu0 0
        %606 = vmatpush1.bf16.msra.mxu0 %v584
        %607 = vmatprep.subr.bf16.mxu0 0
        %608 = vmatpush1.bf16.msra.mxu0 %v583
        %609 = vmatprep.subr.bf16.mxu0 0
        %610 = vmatpush1.bf16.msra.mxu0 %v582
        %611 = vmatprep.subr.bf16.mxu0 0
        %612 = vmatpush1.bf16.msra.mxu0 %v581
        %613 = vmatprep.subr.bf16.mxu0 0
        %614 = vmatpush2.bf16.msra.mxu0 0
        %615 = vmatprep.subr.bf16.mxu0 0
        %616 = vmatpush2.bf16.msra.mxu0 0
        %617 = vmatprep.subr.bf16.mxu0 0
        %618 = vmatpush2.bf16.msra.mxu0 0
        %619 = vmatprep.subr.bf16.mxu0 0
        %620 = vmatpush2.bf16.msra.mxu0 0
        %621 = vmatprep.subr.bf16.mxu0 0
        %622 = vmatpush2.bf16.msra.mxu0 0
        %623 = vmatprep.subr.bf16.mxu0 0
        %624 = vmatpush2.bf16.msra.mxu0 0
        %625 = vmatprep.subr.bf16.mxu0 0
        %626 = vmatpush2.bf16.msra.mxu0 0
        %627 = vmatprep.subr.bf16.mxu0 0
        %628 = vmatpush2.bf16.msra.mxu0 0
        %629 = vmatprep.mubr.bf16.mxu0 0
        %630 = vmatmul.mubr.bf16.gmra.mxu0 %v532
        %v631 = vpop.f32.mrf.mxu0
        %v632 = vadd.f32 0.0, %v631
        %v633 = vpop.f32.mrf.mxu0
        %v634 = vpop.f32.mrf.mxu0
        %v635 = vpop.f32.mrf.mxu0
        %636 = vdwg.mxu0
        %v637 = vadd.f32 %v451, %v632
        %v638 = vld [vmem:[%s7] sm:$0x1]
        %v639 = vunpack.c.l.bf16 %v638
        %v640 = vlaneseq
        %v641 = vshrl.u32 %v640, 7
        %v642 = vsub.s32 0, %v641
        %v643 = vrot.slane %v639, %v642
        %v644 = vadd.f32 %v637, %v643
        %v645 = vld [vmem:[%s371] sm:$0xf]
        %v646 = vunpack.c.l.bf16 %v645
        %v647 = vadd.f32 %v644, %v646
        %v648 = vsel %vm479, %v647, 0.0
        %649 = vadd.xlane.f32.xlu0 %v648
        %v650 = vpop.xlane.xlu0 %649
        %v651 = vrcp.pop 32.0
        %v652 = vmul.f32 %v650, %v651
        %v653 = vmul.f32 %v647, %v647
        %v654 = vsel %vm479, %v653, 0.0
        %655 = vadd.xlane.f32.xlu0 %v654
        %v656 = vpop.xlane.xlu0 %655
        %v657 = vmul.f32 %v656, %v651
        %v658 = vmul.f32 %v652, %v652
        %v659 = vsub.f32 %v657, %v658
        %v660 = vmax.f32 %v659, 0.0
        %v661 = vsub.f32 %v647, %v652
        %v662 = vadd.f32 %v660, 1e-12
        %v663 = vrsqrt.pop %v662
        %v664 = vmul.f32 %v661, %v663
        %v665 = vld [vmem:[%s8] sm:$0x1]
        %v666 = vunpack.c.l.bf16 %v665
        %v667 = vlaneseq
        %v668 = vshrl.u32 %v667, 7
        %v669 = vsub.s32 0, %v668
        %v670 = vrot.slane %v666, %v669
        %v671 = vmul.f32 %v664, %v670
        %v672 = vld [vmem:[%s9] sm:$0x1]
        %v673 = vunpack.c.l.bf16 %v672
        %v674 = vlaneseq
        %v675 = vshrl.u32 %v674, 7
        %v676 = vsub.s32 0, %v675
        %v677 = vrot.slane %v673, %v676
        %v678 = vadd.f32 %v671, %v677
        %v679 = vpack.c.bf16 %v678, %v678
        %vm680 = vcmask 257024
        %681 = vst.msk [vmem:[%s363] sm:$0xf] %vm680, %v679
        %s682 = sand.u32 %s252, 1
        %s683 = scalar_lea.sflag [#allocation3], %s682
        %s684 = sand.u32 %s252, 1
        %s685 = smul.addr %s684, 4
        %s686 = scalar_lea.vmem [#allocation2], %s685
        // Predicated region
        $region61: #{tpu_custom_call.1} parent=59 // pred_check
          %p687 = pneg %p262
        $region62: #{tpu_custom_call.1} parent=59 // pred_check_branch
          %689 = sbr.rel (%p687) target = $region64
        $region63: #{tpu_custom_call.1} parent=59 // pred_region
          %s691 = ssub.s32 64, 64
          %692 = vsyncadd %s683, %s691
          %s693 = smul.addr %s24, 64
          %s694 = scalar_lea.hbm %s10, %s693
          %s696 = sshll.u32 %s686, 4
          %s697 = int_to_ptr.vmem [resolvable:$true] %s696
          %699 = dma.vmem_to_hbm [thread:$0]  %s697, 64, %s694, %s683
        $region64: #{tpu_custom_call.1} parent=59 // pred_fallthru
          _
      $region60: #{tpu_custom_call.1} parent=5 // pred_fallthru
        _
      %p700 = scmp.le.s32.totalorder 2, %s19
      // Predicated region
      $region65: #{tpu_custom_call.1} parent=5 // pred_check
        %p701 = pneg %p700
      $region66: #{tpu_custom_call.1} parent=5 // pred_check_branch
        %703 = sbr.rel (%p701) target = $region68
      $region67: #{tpu_custom_call.1} parent=5 // pred_region
        %s704 = ssub.s32 %s19, 2
        // Predicated region
        $region69: #{tpu_custom_call.1} parent=67 // pred_check
          %p705 = pneg %p268
        $region70: #{tpu_custom_call.1} parent=67 // pred_check_branch
          %707 = sbr.rel (%p705) target = $region72
        $region71: #{tpu_custom_call.1} parent=67 // pred_region
          %s708 = sand.u32 %s253, 1
          %s709 = scalar_lea.sflag [#allocation3], %s708
          %s710 = sand.u32 %s253, 1
          %s711 = smul.addr %s710, 4
          %s712 = scalar_lea.vmem [#allocation2], %s711
          %713 = dma.done %s709, 64
        $region72: #{tpu_custom_call.1} parent=67 // pred_fallthru
          _
      $region68: #{tpu_custom_call.1} parent=5 // pred_fallthru
        _
    $region6: #{tpu_custom_call.1} parent=1 // loop_footer
      %s23 = sadd.s32 1, %s19
    $region7: #{tpu_custom_call.1} parent=1 // loop_footer_branch
      %18 = sbr.rel target = $region3
    $region8: #{tpu_custom_call.1} parent=1 // loop_exit
      _
    %714 = vsyncpa [#allocation3], 1
    %s715 = scalar_lea.sflag [#allocation3], 1
    %716 = vsyncpa %s715, 1

</llo_original>
